<compile_context>
chip_gen: v5e
topology: v5e:2x2
jax: 0.10.0
libtpu: 0.0.40
codegen_flags: <defaults>
</compile_context>

<pallas_src>
import numpy as np

import jax
import jax.numpy as jnp
from jax.experimental import pallas as pl
from jax.experimental.pallas import tpu as pltpu

# ----------------------------- config (small synthetic CLIP text side) -------
CONTEXT_LEN = 32          # CLIP uses 77; small + (8,128)-friendly here
VOCAB       = 512
CTX_DIM     = 128         # ln_final width == ctx_dim (lane-dense)
N_CTX       = 16          # module hardcodes n_ctx = 16 when ctx_init == ''
CLASSNAMES  = ["object", "defect"]
SOT_ID      = VOCAB - 2
EOT_ID      = VOCAB - 1


# ----------------------------- tokenizer (host-side, synthetic) --------------
# TODO(synk): CLIP's BPE tokenizer replaced by a deterministic synthetic word
# tokenizer; string processing has no Pallas equivalent and stays on the host.
def _word_id(w):
    h = 0
    for ch in w:
        h = (h * 131 + ord(ch)) % (VOCAB - 4)
    return 1 + h                                   # ids in [1, VOCAB-4]; 0 = pad


def _encode(text):
    toks = []
    for w in text.strip().split():
        if w.endswith(".") and len(w) > 1:
            toks.append(_word_id(w[:-1]))
            toks.append(_word_id("."))
        else:
            toks.append(_word_id(w))
    return toks


def _tokenize(text):
    toks = [SOT_ID] + _encode(text) + [EOT_ID]
    assert len(toks) <= CONTEXT_LEN
    return toks + [0] * (CONTEXT_LEN - len(toks))


# ----------------------------- host-side prompt index maps -------------------
def build_assembly_indices(position_name, class_token_position="middle"):
    """For every class, compute per-output-position source selectors:
       tok_sel[p] = token id whose embedding fills position p (or -1),
       ctx_sel[p] = learned-ctx row that fills position p    (or -1).
    Exactly one of the two is >= 0 at every position."""
    classnames = [n.replace("_", " ") for n in CLASSNAMES]
    name_lens = [len(_encode(n)) for n in classnames]
    pos_len = len(_encode(position_name))
    prompt_prefix = " ".join(["X"] * N_CTX)
    L = CONTEXT_LEN

    tok_rows, tok_sel, ctx_sel = [], [], []
    for i, name in enumerate(classnames):
        toks = _tokenize(position_name + " " + prompt_prefix + " " + name + ".")
        tok_rows.append(toks)
        nl = name_lens[i]
        pre_end = 1 + pos_len                     # SOT + position-name tokens
        suf_start = pre_end + N_CTX               # name tokens, '.', EOT, pads

        if class_token_position == "middle":
            half = N_CTX // 2
            order = ([("tok", j) for j in range(pre_end)]
                     + [("ctx", j) for j in range(half)]
                     + [("tok", suf_start + j) for j in range(nl)]
                     + [("ctx", j) for j in range(half, N_CTX)]
                     + [("tok", suf_start + nl + j)
                        for j in range(L - suf_start - nl)])
        elif class_token_position == "end":
            order = ([("tok", j) for j in range(pre_end)]
                     + [("ctx", j) for j in range(N_CTX)]
                     + [("tok", suf_start + j) for j in range(L - suf_start)])
        elif class_token_position == "front":
            order = ([("tok", j) for j in range(pre_end)]
                     + [("tok", suf_start + j) for j in range(nl)]
                     + [("ctx", j) for j in range(N_CTX)]
                     + [("tok", suf_start + nl + j)
                        for j in range(L - suf_start - nl)])
        else:
            raise ValueError(class_token_position)
        assert len(order) == L

        ts = np.full((L,), -1, np.int32)
        cs = np.full((L,), -1, np.int32)
        for p, (kind, j) in enumerate(order):
            if kind == "tok":
                ts[p] = toks[j]
            else:
                cs[p] = j
        tok_sel.append(ts)
        ctx_sel.append(cs)

    tokenized = np.asarray(tok_rows, np.int32)                 # (n_cls, L)
    tok_sel = np.stack(tok_sel).reshape(-1, 1).astype(np.int32)  # (n_cls*L, 1)
    ctx_sel = np.stack(ctx_sel).reshape(-1, 1).astype(np.int32)
    return tokenized, tok_sel, ctx_sel, name_lens, pos_len


# ----------------------------- Pallas kernel ---------------------------------
def _prompt_assemble_kernel(tok_ref, ctxi_ref, emb_ref, ctx_ref, out_ref):
    """prompts = onehot(tok_ids) @ token_embedding + onehot(ctx_ids) @ ctx.
    -1 sentinels produce all-zero one-hot rows, so the two terms are mutually
    exclusive and the sum is an exact select (f32 MXU accumulate => bit-exact
    embedding lookup)."""
    RL = tok_ref.shape[0]
    V = emb_ref.shape[0]
    N = ctx_ref.shape[0]
    tok_oh = (tok_ref[...] ==
              jax.lax.broadcasted_iota(jnp.int32, (RL, V), 1)).astype(jnp.float32)
    ctx_oh = (ctxi_ref[...] ==
              jax.lax.broadcasted_iota(jnp.int32, (RL, N), 1)).astype(jnp.float32)
    out = jnp.dot(tok_oh, emb_ref[...], preferred_element_type=jnp.float32)
    out = out + jnp.dot(ctx_oh, ctx_ref[...], preferred_element_type=jnp.float32)
    out_ref[...] = out.astype(out_ref.dtype)


def prompt_learner_forward(params, position_name, class_token_position="middle"):
    """Returns (prompts, tokenized_prompts) like the PyTorch module:
       prompts           : (n_cls, CONTEXT_LEN, CTX_DIM) f32
       tokenized_prompts : (n_cls, CONTEXT_LEN) int32"""
    tokenized, tok_sel, ctx_sel, _, _ = build_assembly_indices(
        position_name, class_token_position)
    n_cls = tokenized.shape[0]
    RL = n_cls * CONTEXT_LEN
    rep = lambda i: (0, 0)

    # TODO(synk): class_specify=True (per-class ctx) not implemented; the module
    # default is a single generic context, which is what is assembled here.
    prompts_flat = pl.pallas_call(
        _prompt_assemble_kernel,
        out_shape=jax.ShapeDtypeStruct((RL, CTX_DIM), jnp.float32),
        grid=(1,),
        in_specs=[
            pl.BlockSpec((RL, 1), rep),              # token-id selector
            pl.BlockSpec((RL, 1), rep),              # ctx-row selector
            pl.BlockSpec((VOCAB, CTX_DIM), rep),     # token embedding table
            pl.BlockSpec((N_CTX, CTX_DIM), rep),     # learned context
        ],
        out_specs=pl.BlockSpec((RL, CTX_DIM), rep),
        compiler_params=pltpu.CompilerParams(
            dimension_semantics=("arbitrary",)),
    )(jnp.asarray(tok_sel), jnp.asarray(ctx_sel),
      params["token_embedding"], params["ctx"])

    prompts = prompts_flat.reshape(n_cls, CONTEXT_LEN, CTX_DIM)
    return prompts, jnp.asarray(tokenized)


# ----------------------------- pure-JAX/NumPy reference ----------------------
def reference_prompts(params, position_name, class_token_position="middle"):
    """Mirrors the PyTorch concatenation loop of PromptLearner.forward."""
    classnames = [n.replace("_", " ") for n in CLASSNAMES]
    name_lens = [len(_encode(n)) for n in classnames]
    pos_len = len(_encode(position_name))
    prompt_prefix = " ".join(["X"] * N_CTX)
    toks = np.asarray(
        [_tokenize(position_name + " " + prompt_prefix + " " + n + ".")
         for n in classnames], np.int32)
    embedding = np.asarray(params["token_embedding"])[toks]    # (n_cls, L, D)
    prefix = embedding[:, :1 + pos_len]
    suffix = embedding[:, 1 + pos_len + N_CTX:]
    ctx = np.asarray(params["ctx"])
    ctx_e = np.broadcast_to(ctx[None], (len(classnames), N_CTX, CTX_DIM))
    half = N_CTX // 2
    rows = []
    for i in range(len(classnames)):
        nl = name_lens[i]
        if class_token_position == "middle":
            row = np.concatenate([prefix[i], ctx_e[i, :half], suffix[i, :nl],
                                  ctx_e[i, half:], suffix[i, nl:]], axis=0)
        elif class_token_position == "end":
            row = np.concatenate([prefix[i], ctx_e[i], suffix[i]], axis=0)
        elif class_token_position == "front":
            row = np.concatenate([prefix[i], suffix[i, :nl], ctx_e[i],
                                  suffix[i, nl:]], axis=0)
        else:
            raise ValueError(class_token_position)
        rows.append(row)
    return np.stack(rows), toks


# ----------------------------- main -------------------------------------------
if __name__ == "__main__":
    key = jax.random.PRNGKey(0)
    k_emb, k_ctx = jax.random.split(key)
    params = {
        # clip_model.token_embedding.weight
        "token_embedding": jax.random.normal(k_emb, (VOCAB, CTX_DIM),
                                             jnp.float32) * 0.02,
        # PromptLearner generic ctx: nn.init.normal_(std=0.02)
        "ctx": jax.random.normal(k_ctx, (N_CTX, CTX_DIM), jnp.float32) * 0.02,
    }

    position_name = "front"
    n_cls = len(CLASSNAMES)

    for pos_mode in ("middle", "end", "front"):
        prompts, tokenized = prompt_learner_forward(params, position_name,
                                                    pos_mode)
        prompts = jax.block_until_ready(prompts)
        ref_prompts, ref_toks = reference_prompts(params, position_name,
                                                  pos_mode)
        assert prompts.shape == (n_cls, CONTEXT_LEN, CTX_DIM)
        assert tokenized.shape == (n_cls, CONTEXT_LEN)
        np.testing.assert_array_equal(np.asarray(tokenized), ref_toks)
        np.testing.assert_allclose(np.asarray(prompts), ref_prompts,
                                   rtol=0.0, atol=1e-6)
        assert bool(jnp.all(jnp.isfinite(prompts)))

    print("KERNEL_OK")
</pallas_src>

<mosaic_0001>
module attributes {stable_mosaic.version = 11 : i64} {
  func.func @_prompt_assemble_kernel(%arg0: i32, %arg1: memref<64x1xi32, #tpu.memory_space<vmem>>, %arg2: memref<64x1xi32, #tpu.memory_space<vmem>>, %arg3: memref<512x128xf32, #tpu.memory_space<vmem>>, %arg4: memref<16x128xf32, #tpu.memory_space<vmem>>, %arg5: memref<64x128xf32, #tpu.memory_space<vmem>>) attributes {dimension_semantics = [#tpu.dimension_semantics<arbitrary>], iteration_bounds = array<i64: 1>, scalar_prefetch = 0 : i64, scratch_operands = 0 : i64, tpu.core_type = #tpu.core_type<tc>, window_params = [{pipeline_mode = #tpu.pipeline_mode<synchronous>, transform_indices = @transform_0, window_bounds = array<i64: 64, 1>}, {pipeline_mode = #tpu.pipeline_mode<synchronous>, transform_indices = @transform_1, window_bounds = array<i64: 64, 1>}, {pipeline_mode = #tpu.pipeline_mode<synchronous>, transform_indices = @transform_2, window_bounds = array<i64: 512, 128>}, {pipeline_mode = #tpu.pipeline_mode<synchronous>, transform_indices = @transform_3, window_bounds = array<i64: 16, 128>}, {pipeline_mode = #tpu.pipeline_mode<synchronous>, transform_indices = @transform_4, window_bounds = array<i64: 64, 128>}]} {
    %c0 = arith.constant 0 : index
    %c0_0 = arith.constant 0 : index
    %0 = vector.load %arg1[%c0, %c0_0] : memref<64x1xi32, #tpu.memory_space<vmem>>, vector<64x1xi32>
    %1 = tpu.iota {dimensions = array<i32: 1>} : vector<64x512xi32>
    %2 = vector.broadcast %0 : vector<64x1xi32> to vector<64x512xi32>
    %3 = arith.cmpi eq, %2, %1 : vector<64x512xi32>
    %4 = arith.extui %3 : vector<64x512xi1> to vector<64x512xi32>
    %5 = arith.sitofp %4 : vector<64x512xi32> to vector<64x512xf32>
    %c0_1 = arith.constant 0 : index
    %c0_2 = arith.constant 0 : index
    %6 = vector.load %arg2[%c0_1, %c0_2] : memref<64x1xi32, #tpu.memory_space<vmem>>, vector<64x1xi32>
    %7 = tpu.iota {dimensions = array<i32: 1>} : vector<64x16xi32>
    %8 = vector.broadcast %6 : vector<64x1xi32> to vector<64x16xi32>
    %9 = arith.cmpi eq, %8, %7 : vector<64x16xi32>
    %10 = arith.extui %9 : vector<64x16xi1> to vector<64x16xi32>
    %11 = arith.sitofp %10 : vector<64x16xi32> to vector<64x16xf32>
    %c0_3 = arith.constant 0 : index
    %c0_4 = arith.constant 0 : index
    %12 = vector.load %arg3[%c0_3, %c0_4] : memref<512x128xf32, #tpu.memory_space<vmem>>, vector<512x128xf32>
    %cst = arith.constant dense<0.000000e+00> : vector<64x128xf32>
    %13 = tpu.matmul %5, %12, %cst {dimension_numbers = #tpu.dot_dimension_numbers<[1], [0], [0], [1], [0, 0, 1, 1], [], []>} : vector<64x512xf32>, vector<512x128xf32>, vector<64x128xf32> -> vector<64x128xf32>
    %c0_5 = arith.constant 0 : index
    %c0_6 = arith.constant 0 : index
    %14 = vector.load %arg4[%c0_5, %c0_6] : memref<16x128xf32, #tpu.memory_space<vmem>>, vector<16x128xf32>
    %cst_7 = arith.constant dense<0.000000e+00> : vector<64x128xf32>
    %15 = tpu.matmul %11, %14, %cst_7 {dimension_numbers = #tpu.dot_dimension_numbers<[1], [0], [0], [1], [0, 0, 1, 1], [], []>} : vector<64x16xf32>, vector<16x128xf32>, vector<64x128xf32> -> vector<64x128xf32>
    %16 = arith.addf %13, %15 : vector<64x128xf32>
    %c0_8 = arith.constant 0 : index
    %c0_9 = arith.constant 0 : index
    %17 = vector.load %arg5[%c0_8, %c0_9] : memref<64x128xf32, #tpu.memory_space<vmem>>, vector<64x128xf32>
    tpu.vector_store %arg5[%c0_8, %c0_9], %16 {strides = array<i32>} : memref<64x128xf32, #tpu.memory_space<vmem>>, vector<64x128xf32>,
    return
  }
  func.func @transform_0(%arg0: i32) -> (i32, i32) {
    %c0_i32 = arith.constant 0 : i32
    %c0_i32_0 = arith.constant 0 : i32
    %c0_i32_1 = arith.constant 0 : i32
    return %c0_i32, %c0_i32_0 : i32, i32
  }
  func.func @transform_1(%arg0: i32) -> (i32, i32) {
    %c0_i32 = arith.constant 0 : i32
    %c0_i32_0 = arith.constant 0 : i32
    %c0_i32_1 = arith.constant 0 : i32
    return %c0_i32, %c0_i32_0 : i32, i32
  }
  func.func @transform_2(%arg0: i32) -> (i32, i32) {
    %c0_i32 = arith.constant 0 : i32
    %c0_i32_0 = arith.constant 0 : i32
    %c0_i32_1 = arith.constant 0 : i32
    return %c0_i32, %c0_i32_0 : i32, i32
  }
  func.func @transform_3(%arg0: i32) -> (i32, i32) {
    %c0_i32 = arith.constant 0 : i32
    %c0_i32_0 = arith.constant 0 : i32
    %c0_i32_1 = arith.constant 0 : i32
    return %c0_i32, %c0_i32_0 : i32, i32
  }
  func.func @transform_4(%arg0: i32) -> (i32, i32) {
    %c0_i32 = arith.constant 0 : i32
    %c0_i32_0 = arith.constant 0 : i32
    %c0_i32_1 = arith.constant 0 : i32
    return %c0_i32, %c0_i32_0 : i32, i32
  }
}

</mosaic_0001>

<llo_original>
// kernel: tpu_custom_call.1
$region0: #{tpu_custom_call.1}
  #allocation0 [shape = 'u32[]', space=smem, size = 0x4, offset = 0x4, fixed_abs, tag = 'smem constant byte address 0x4 - core index']
  #allocation1 [shape = 'u32[72,128]{1,0:T(1,128)}', space=vmem, size = 0x9000, scoped, tag = 'internal scratch']
  %s0 = inlined_call_operand.vmem [shape: s32[64,1], index: 0, kind: input, shape index: {}]
  %s1 = inlined_call_operand.vmem [shape: s32[64,1], index: 1, kind: input, shape index: {}]
  %s2 = inlined_call_operand.hbm [shape: f32[512,128], index: 2, kind: input, shape index: {}]
  %s3 = inlined_call_operand.vmem [shape: f32[16,128], index: 3, kind: input, shape index: {}]
  %s4 = inlined_call_operand.hbm [shape: f32[64,128], index: 4, kind: output, shape index: {}]
  %s5 = sld [smem:[#allocation0]]
  $region30: #{tpu_custom_call.1} parent=0
    _
  %s7 = ssub.s32 1, %s5
  %s8 = scalar_select 0, %s7, %s5
  $region1: #{tpu_custom_call.1} parent=0
    #allocation2 [shape = 'u8[262144]{0}', space=vmem, size = 0x40000, scoped, tag = 'input window, operand 2, single buffered']
    #allocation3 [shape = 's32[1]{0}', space=sflag, size = 0x4, scoped, tag = 'scoped memory for tpu_custom_call.1']
    #allocation4 [shape = 's32[1]{0}', space=sflag, size = 0x4, scoped, tag = 'scoped memory for tpu_custom_call.1']
    #allocation5 [shape = 'u8[32768]{0}', space=vmem, size = 0x8000, scoped, tag = 'output window, operand 0, single buffered']
    %9 = vsyncpa [#allocation3], 0
    %10 = vsyncpa [#allocation4], 0
    // Predicated region
    $region2: #{tpu_custom_call.1} parent=1 // pred_check
      _
    $region3: #{tpu_custom_call.1} parent=1 // pred_check_branch
      %12 = sbr.rel (0) target = $region5
    $region4: #{tpu_custom_call.1} parent=1 // pred_region
      _
    $region5: #{tpu_custom_call.1} parent=1 // pred_fallthru
      _
    // Predicated region
    $region6: #{tpu_custom_call.1} parent=1 // pred_check
      _
    $region7: #{tpu_custom_call.1} parent=1 // pred_check_branch
      %14 = sbr.rel (0) target = $region9
    $region8: #{tpu_custom_call.1} parent=1 // pred_region
      _
    $region9: #{tpu_custom_call.1} parent=1 // pred_fallthru
      _
    // Predicated region
    $region10: #{tpu_custom_call.1} parent=1 // pred_check
      _
    $region11: #{tpu_custom_call.1} parent=1 // pred_check_branch
      %16 = sbr.rel (0) target = $region13
    $region12: #{tpu_custom_call.1} parent=1 // pred_region
      %18 = vsyncadd [#allocation3], 0
      %s19 = sshll.u32 %s2, 4
      %s20 = int_to_ptr.hbm [resolvable:$true] %s19
      %s21 = sshll.u32 [#allocation2], 4
      %s22 = int_to_ptr.vmem [resolvable:$true] %s21
      %27 = dma.hbm_to_vmem [thread:$0]  %s20, 8192, %s22, [#allocation3], 128, 128, 8
    $region13: #{tpu_custom_call.1} parent=1 // pred_fallthru
      _
    // Predicated region
    $region14: #{tpu_custom_call.1} parent=1 // pred_check
      _
    $region15: #{tpu_custom_call.1} parent=1 // pred_check_branch
      %29 = sbr.rel (0) target = $region17
    $region16: #{tpu_custom_call.1} parent=1 // pred_region
      _
    $region17: #{tpu_custom_call.1} parent=1 // pred_fallthru
      _
    // Predicated region
    $region18: #{tpu_custom_call.1} parent=1 // pred_check
      _
    $region19: #{tpu_custom_call.1} parent=1 // pred_check_branch
      %31 = sbr.rel (0) target = $region21
    $region20: #{tpu_custom_call.1} parent=1 // pred_region
      %33 = dma.done [#allocation3], 8192
    $region21: #{tpu_custom_call.1} parent=1 // pred_fallthru
      _
    %v34 = vld [vmem:[%s0] sm:$0xff]
    %v35 = vld [vmem:[%s0 + $0x8] sm:$0xff]
    %v36 = vld [vmem:[%s0 + $0x10] sm:$0xff]
    %v37 = vld [vmem:[%s0 + $0x18] sm:$0xff]
    %v38 = vld [vmem:[%s0 + $0x20] sm:$0xff]
    %v39 = vld [vmem:[%s0 + $0x28] sm:$0xff]
    %v40 = vld [vmem:[%s0 + $0x30] sm:$0xff]
    %v41 = vld [vmem:[%s0 + $0x38] sm:$0xff]
    %v42 = vlaneseq
    %v43 = vand.u32 %v42, 127
    %v44 = vadd.s32 %v43, 128
    %v45 = vadd.s32 %v43, 256
    %v46 = vadd.s32 %v43, 384
    %47 = vset.pattern.permute.xlu0 0
    %48 = vperm.xlu0 %47, %v34
    %v49 = vpop.permute.xlu0 %48
    %50 = vset.pattern.permute.xlu0 0
    %51 = vperm.xlu0 %50, %v35
    %v52 = vpop.permute.xlu0 %51
    %53 = vset.pattern.permute.xlu0 0
    %54 = vperm.xlu0 %53, %v36
    %v55 = vpop.permute.xlu0 %54
    %56 = vset.pattern.permute.xlu0 0
    %57 = vperm.xlu0 %56, %v37
    %v58 = vpop.permute.xlu0 %57
    %59 = vset.pattern.permute.xlu0 0
    %60 = vperm.xlu0 %59, %v38
    %v61 = vpop.permute.xlu0 %60
    %62 = vset.pattern.permute.xlu0 0
    %63 = vperm.xlu0 %62, %v39
    %v64 = vpop.permute.xlu0 %63
    %65 = vset.pattern.permute.xlu0 0
    %66 = vperm.xlu0 %65, %v40
    %v67 = vpop.permute.xlu0 %66
    %68 = vset.pattern.permute.xlu0 0
    %69 = vperm.xlu0 %68, %v41
    %v70 = vpop.permute.xlu0 %69
    %vm71 = vcmp.eq.s32.totalorder %v49, %v43
    %vm72 = vcmp.eq.s32.totalorder %v49, %v44
    %vm73 = vcmp.eq.s32.totalorder %v49, %v45
    %vm74 = vcmp.eq.s32.totalorder %v49, %v46
    %vm75 = vcmp.eq.s32.totalorder %v52, %v43
    %vm76 = vcmp.eq.s32.totalorder %v52, %v44
    %vm77 = vcmp.eq.s32.totalorder %v52, %v45
    %vm78 = vcmp.eq.s32.totalorder %v52, %v46
    %vm79 = vcmp.eq.s32.totalorder %v55, %v43
    %vm80 = vcmp.eq.s32.totalorder %v55, %v44
    %vm81 = vcmp.eq.s32.totalorder %v55, %v45
    %vm82 = vcmp.eq.s32.totalorder %v55, %v46
    %vm83 = vcmp.eq.s32.totalorder %v58, %v43
    %vm84 = vcmp.eq.s32.totalorder %v58, %v44
    %vm85 = vcmp.eq.s32.totalorder %v58, %v45
    %vm86 = vcmp.eq.s32.totalorder %v58, %v46
    %vm87 = vcmp.eq.s32.totalorder %v61, %v43
    %vm88 = vcmp.eq.s32.totalorder %v61, %v44
    %vm89 = vcmp.eq.s32.totalorder %v61, %v45
    %vm90 = vcmp.eq.s32.totalorder %v61, %v46
    %vm91 = vcmp.eq.s32.totalorder %v64, %v43
    %vm92 = vcmp.eq.s32.totalorder %v64, %v44
    %vm93 = vcmp.eq.s32.totalorder %v64, %v45
    %vm94 = vcmp.eq.s32.totalorder %v64, %v46
    %vm95 = vcmp.eq.s32.totalorder %v67, %v43
    %vm96 = vcmp.eq.s32.totalorder %v67, %v44
    %vm97 = vcmp.eq.s32.totalorder %v67, %v45
    %vm98 = vcmp.eq.s32.totalorder %v67, %v46
    %vm99 = vcmp.eq.s32.totalorder %v70, %v43
    %vm100 = vcmp.eq.s32.totalorder %v70, %v44
    %vm101 = vcmp.eq.s32.totalorder %v70, %v45
    %vm102 = vcmp.eq.s32.totalorder %v70, %v46
    %v103 = vsel %vm71, 1, 0
    %v104 = vsel %vm72, 1, 0
    %v105 = vsel %vm73, 1, 0
    %v106 = vsel %vm74, 1, 0
    %v107 = vsel %vm75, 1, 0
    %v108 = vsel %vm76, 1, 0
    %v109 = vsel %vm77, 1, 0
    %v110 = vsel %vm78, 1, 0
    %v111 = vsel %vm79, 1, 0
    %v112 = vsel %vm80, 1, 0
    %v113 = vsel %vm81, 1, 0
    %v114 = vsel %vm82, 1, 0
    %v115 = vsel %vm83, 1, 0
    %v116 = vsel %vm84, 1, 0
    %v117 = vsel %vm85, 1, 0
    %v118 = vsel %vm86, 1, 0
    %v119 = vsel %vm87, 1, 0
    %v120 = vsel %vm88, 1, 0
    %v121 = vsel %vm89, 1, 0
    %v122 = vsel %vm90, 1, 0
    %v123 = vsel %vm91, 1, 0
    %v124 = vsel %vm92, 1, 0
    %v125 = vsel %vm93, 1, 0
    %v126 = vsel %vm94, 1, 0
    %v127 = vsel %vm95, 1, 0
    %v128 = vsel %vm96, 1, 0
    %v129 = vsel %vm97, 1, 0
    %v130 = vsel %vm98, 1, 0
    %v131 = vsel %vm99, 1, 0
    %v132 = vsel %vm100, 1, 0
    %v133 = vsel %vm101, 1, 0
    %v134 = vsel %vm102, 1, 0
    %v135 = vcvt.s32.f32 %v103
    %v136 = vcvt.s32.f32 %v104
    %v137 = vcvt.s32.f32 %v105
    %v138 = vcvt.s32.f32 %v106
    %v139 = vcvt.s32.f32 %v107
    %v140 = vcvt.s32.f32 %v108
    %v141 = vcvt.s32.f32 %v109
    %v142 = vcvt.s32.f32 %v110
    %v143 = vcvt.s32.f32 %v111
    %v144 = vcvt.s32.f32 %v112
    %v145 = vcvt.s32.f32 %v113
    %v146 = vcvt.s32.f32 %v114
    %v147 = vcvt.s32.f32 %v115
    %v148 = vcvt.s32.f32 %v116
    %v149 = vcvt.s32.f32 %v117
    %v150 = vcvt.s32.f32 %v118
    %v151 = vcvt.s32.f32 %v119
    %v152 = vcvt.s32.f32 %v120
    %v153 = vcvt.s32.f32 %v121
    %v154 = vcvt.s32.f32 %v122
    %v155 = vcvt.s32.f32 %v123
    %v156 = vcvt.s32.f32 %v124
    %v157 = vcvt.s32.f32 %v125
    %v158 = vcvt.s32.f32 %v126
    %v159 = vcvt.s32.f32 %v127
    %v160 = vcvt.s32.f32 %v128
    %v161 = vcvt.s32.f32 %v129
    %v162 = vcvt.s32.f32 %v130
    %v163 = vcvt.s32.f32 %v131
    %v164 = vcvt.s32.f32 %v132
    %v165 = vcvt.s32.f32 %v133
    %v166 = vcvt.s32.f32 %v134
    %v167 = vld [vmem:[%s1] sm:$0xff]
    %v168 = vld [vmem:[%s1 + $0x8] sm:$0xff]
    %v169 = vld [vmem:[%s1 + $0x10] sm:$0xff]
    %v170 = vld [vmem:[%s1 + $0x18] sm:$0xff]
    %v171 = vld [vmem:[%s1 + $0x20] sm:$0xff]
    %v172 = vld [vmem:[%s1 + $0x28] sm:$0xff]
    %v173 = vld [vmem:[%s1 + $0x30] sm:$0xff]
    %v174 = vld [vmem:[%s1 + $0x38] sm:$0xff]
    %175 = vset.pattern.permute.xlu0 0
    %176 = vperm.xlu0 %175, %v167
    %v177 = vpop.permute.xlu0 %176
    %178 = vset.pattern.permute.xlu0 0
    %179 = vperm.xlu0 %178, %v168
    %v180 = vpop.permute.xlu0 %179
    %181 = vset.pattern.permute.xlu0 0
    %182 = vperm.xlu0 %181, %v169
    %v183 = vpop.permute.xlu0 %182
    %184 = vset.pattern.permute.xlu0 0
    %185 = vperm.xlu0 %184, %v170
    %v186 = vpop.permute.xlu0 %185
    %187 = vset.pattern.permute.xlu0 0
    %188 = vperm.xlu0 %187, %v171
    %v189 = vpop.permute.xlu0 %188
    %190 = vset.pattern.permute.xlu0 0
    %191 = vperm.xlu0 %190, %v172
    %v192 = vpop.permute.xlu0 %191
    %193 = vset.pattern.permute.xlu0 0
    %194 = vperm.xlu0 %193, %v173
    %v195 = vpop.permute.xlu0 %194
    %196 = vset.pattern.permute.xlu0 0
    %197 = vperm.xlu0 %196, %v174
    %v198 = vpop.permute.xlu0 %197
    %vm199 = vcmp.eq.s32.totalorder %v177, %v43
    %vm200 = vcmp.eq.s32.totalorder %v180, %v43
    %vm201 = vcmp.eq.s32.totalorder %v183, %v43
    %vm202 = vcmp.eq.s32.totalorder %v186, %v43
    %vm203 = vcmp.eq.s32.totalorder %v189, %v43
    %vm204 = vcmp.eq.s32.totalorder %v192, %v43
    %vm205 = vcmp.eq.s32.totalorder %v195, %v43
    %vm206 = vcmp.eq.s32.totalorder %v198, %v43
    %v207 = vsel %vm199, 1, 0
    %v208 = vsel %vm200, 1, 0
    %v209 = vsel %vm201, 1, 0
    %v210 = vsel %vm202, 1, 0
    %v211 = vsel %vm203, 1, 0
    %v212 = vsel %vm204, 1, 0
    %v213 = vsel %vm205, 1, 0
    %v214 = vsel %vm206, 1, 0
    %v215 = vcvt.s32.f32 %v207
    %v216 = vcvt.s32.f32 %v208
    %v217 = vcvt.s32.f32 %v209
    %v218 = vcvt.s32.f32 %v210
    %v219 = vcvt.s32.f32 %v211
    %v220 = vcvt.s32.f32 %v212
    %v221 = vcvt.s32.f32 %v213
    %v222 = vcvt.s32.f32 %v214
    %v223 = vld [vmem:[#allocation2] sm:$0xff]
    %v224 = vld [vmem:[#allocation2 + $0x8] sm:$0xff]
    %v225 = vld [vmem:[#allocation2 + $0x10] sm:$0xff]
    %v226 = vld [vmem:[#allocation2 + $0x18] sm:$0xff]
    %v227 = vld [vmem:[#allocation2 + $0x20] sm:$0xff]
    %v228 = vld [vmem:[#allocation2 + $0x28] sm:$0xff]
    %v229 = vld [vmem:[#allocation2 + $0x30] sm:$0xff]
    %v230 = vld [vmem:[#allocation2 + $0x38] sm:$0xff]
    %v231 = vld [vmem:[#allocation2 + $0x40] sm:$0xff]
    %v232 = vld [vmem:[#allocation2 + $0x48] sm:$0xff]
    %v233 = vld [vmem:[#allocation2 + $0x50] sm:$0xff]
    %v234 = vld [vmem:[#allocation2 + $0x58] sm:$0xff]
    %v235 = vld [vmem:[#allocation2 + $0x60] sm:$0xff]
    %v236 = vld [vmem:[#allocation2 + $0x68] sm:$0xff]
    %v237 = vld [vmem:[#allocation2 + $0x70] sm:$0xff]
    %v238 = vld [vmem:[#allocation2 + $0x78] sm:$0xff]
    %v239 = vld [vmem:[#allocation2 + $0x80] sm:$0xff]
    %v240 = vld [vmem:[#allocation2 + $0x88] sm:$0xff]
    %v241 = vld [vmem:[#allocation2 + $0x90] sm:$0xff]
    %v242 = vld [vmem:[#allocation2 + $0x98] sm:$0xff]
    %v243 = vld [vmem:[#allocation2 + $0xa0] sm:$0xff]
    %v244 = vld [vmem:[#allocation2 + $0xa8] sm:$0xff]
    %v245 = vld [vmem:[#allocation2 + $0xb0] sm:$0xff]
    %v246 = vld [vmem:[#allocation2 + $0xb8] sm:$0xff]
    %v247 = vld [vmem:[#allocation2 + $0xc0] sm:$0xff]
    %v248 = vld [vmem:[#allocation2 + $0xc8] sm:$0xff]
    %v249 = vld [vmem:[#allocation2 + $0xd0] sm:$0xff]
    %v250 = vld [vmem:[#allocation2 + $0xd8] sm:$0xff]
    %v251 = vld [vmem:[#allocation2 + $0xe0] sm:$0xff]
    %v252 = vld [vmem:[#allocation2 + $0xe8] sm:$0xff]
    %v253 = vld [vmem:[#allocation2 + $0xf0] sm:$0xff]
    %v254 = vld [vmem:[#allocation2 + $0xf8] sm:$0xff]
    %v255 = vld [vmem:[#allocation2 + $0x100] sm:$0xff]
    %v256 = vld [vmem:[#allocation2 + $0x108] sm:$0xff]
    %v257 = vld [vmem:[#allocation2 + $0x110] sm:$0xff]
    %v258 = vld [vmem:[#allocation2 + $0x118] sm:$0xff]
    %v259 = vld [vmem:[#allocation2 + $0x120] sm:$0xff]
    %v260 = vld [vmem:[#allocation2 + $0x128] sm:$0xff]
    %v261 = vld [vmem:[#allocation2 + $0x130] sm:$0xff]
    %v262 = vld [vmem:[#allocation2 + $0x138] sm:$0xff]
    %v263 = vld [vmem:[#allocation2 + $0x140] sm:$0xff]
    %v264 = vld [vmem:[#allocation2 + $0x148] sm:$0xff]
    %v265 = vld [vmem:[#allocation2 + $0x150] sm:$0xff]
    %v266 = vld [vmem:[#allocation2 + $0x158] sm:$0xff]
    %v267 = vld [vmem:[#allocation2 + $0x160] sm:$0xff]
    %v268 = vld [vmem:[#allocation2 + $0x168] sm:$0xff]
    %v269 = vld [vmem:[#allocation2 + $0x170] sm:$0xff]
    %v270 = vld [vmem:[#allocation2 + $0x178] sm:$0xff]
    %v271 = vld [vmem:[#allocation2 + $0x180] sm:$0xff]
    %v272 = vld [vmem:[#allocation2 + $0x188] sm:$0xff]
    %v273 = vld [vmem:[#allocation2 + $0x190] sm:$0xff]
    %v274 = vld [vmem:[#allocation2 + $0x198] sm:$0xff]
    %v275 = vld [vmem:[#allocation2 + $0x1a0] sm:$0xff]
    %v276 = vld [vmem:[#allocation2 + $0x1a8] sm:$0xff]
    %v277 = vld [vmem:[#allocation2 + $0x1b0] sm:$0xff]
    %v278 = vld [vmem:[#allocation2 + $0x1b8] sm:$0xff]
    %v279 = vld [vmem:[#allocation2 + $0x1c0] sm:$0xff]
    %v280 = vld [vmem:[#allocation2 + $0x1c8] sm:$0xff]
    %v281 = vld [vmem:[#allocation2 + $0x1d0] sm:$0xff]
    %v282 = vld [vmem:[#allocation2 + $0x1d8] sm:$0xff]
    %v283 = vld [vmem:[#allocation2 + $0x1e0] sm:$0xff]
    %v284 = vld [vmem:[#allocation2 + $0x1e8] sm:$0xff]
    %v285 = vld [vmem:[#allocation2 + $0x1f0] sm:$0xff]
    %v286 = vld [vmem:[#allocation2 + $0x1f8] sm:$0xff]
    %v287 = vld [vmem:[%s3] sm:$0xff]
    %v288 = vld [vmem:[%s3 + $0x8] sm:$0xff]
    %vm289 = vcmask 130048
    %v291 = vsel %vm289, %v215, 0
    %v294 = vsel %vm289, %v216, 0
    %v297 = vsel %vm289, %v217, 0
    %v300 = vsel %vm289, %v218, 0
    %v303 = vsel %vm289, %v219, 0
    %v306 = vsel %vm289, %v220, 0
    %v309 = vsel %vm289, %v221, 0
    %v312 = vsel %vm289, %v222, 0
    %314 = vmatpush.msra.mxu0 0.0
    %315 = vmatpush.msra.mxu0 0.0
    %316 = vmatpush.msra.mxu0 0.0
    %317 = vmatpush.msra.mxu0 0.0
    %318 = vmatpush.msra.mxu0 0.0
    %319 = vmatpush.msra.mxu0 0.0
    %320 = vmatpush.msra.mxu0 0.0
    %321 = vmatpush.msra.mxu0 0.0
    %322 = vmatpush.msra.mxu0 0.0
    %323 = vmatpush.msra.mxu0 0.0
    %324 = vmatpush.msra.mxu0 0.0
    %325 = vmatpush.msra.mxu0 0.0
    %326 = vmatpush.msra.mxu0 0.0
    %327 = vmatpush.msra.mxu0 0.0
    %328 = vmatpush.msra.mxu0 %v288
    %329 = vmatpush.msra.mxu0 %v287
    %330 = vmatmul.f32.gmra.mxu0 %v291
    %v331 = vpop.f32.mrf.mxu0
    %v332 = vadd.f32 0.0, %v331
    %333 = vmatmul.f32.gmra.mxu0 %v294
    %v334 = vpop.f32.mrf.mxu0
    %v335 = vadd.f32 0.0, %v334
    %336 = vmatmul.f32.gmra.mxu0 %v297
    %v337 = vpop.f32.mrf.mxu0
    %v338 = vadd.f32 0.0, %v337
    %339 = vmatmul.f32.gmra.mxu0 %v300
    %v340 = vpop.f32.mrf.mxu0
    %v341 = vadd.f32 0.0, %v340
    %342 = vmatmul.f32.gmra.mxu0 %v303
    %v343 = vpop.f32.mrf.mxu0
    %v344 = vadd.f32 0.0, %v343
    %345 = vmatmul.f32.gmra.mxu0 %v306
    %v346 = vpop.f32.mrf.mxu0
    %v347 = vadd.f32 0.0, %v346
    %348 = vmatmul.f32.gmra.mxu0 %v309
    %v349 = vpop.f32.mrf.mxu0
    %v350 = vadd.f32 0.0, %v349
    %351 = vmatmul.f32.gmra.mxu0 %v312
    %v352 = vpop.f32.mrf.mxu0
    %v353 = vadd.f32 0.0, %v352
    %354 = vdwg.mxu0
    %355 = vmatpush.msra.mxu0 %v238
    %356 = vmatpush.msra.mxu0 %v237
    %357 = vmatpush.msra.mxu0 %v236
    %358 = vmatpush.msra.mxu0 %v235
    %359 = vmatpush.msra.mxu0 %v234
    %360 = vmatpush.msra.mxu0 %v233
    %361 = vmatpush.msra.mxu0 %v232
    %362 = vmatpush.msra.mxu0 %v231
    %363 = vmatpush.msra.mxu0 %v230
    %364 = vmatpush.msra.mxu0 %v229
    %365 = vmatpush.msra.mxu0 %v228
    %366 = vmatpush.msra.mxu0 %v227
    %367 = vmatpush.msra.mxu0 %v226
    %368 = vmatpush.msra.mxu0 %v225
    %369 = vmatpush.msra.mxu0 %v224
    %370 = vmatpush.msra.mxu0 %v223
    %371 = vmatmul.f32.gmra.mxu0 %v135
    %v372 = vpop.f32.mrf.mxu0
    %v373 = vadd.f32 %v332, %v372
    %374 = vmatmul.f32.gmra.mxu0 %v139
    %v375 = vpop.f32.mrf.mxu0
    %v376 = vadd.f32 %v335, %v375
    %377 = vmatmul.f32.gmra.mxu0 %v143
    %v378 = vpop.f32.mrf.mxu0
    %v379 = vadd.f32 %v338, %v378
    %380 = vmatmul.f32.gmra.mxu0 %v147
    %v381 = vpop.f32.mrf.mxu0
    %v382 = vadd.f32 %v341, %v381
    %383 = vmatmul.f32.gmra.mxu0 %v151
    %v384 = vpop.f32.mrf.mxu0
    %v385 = vadd.f32 %v344, %v384
    %386 = vmatmul.f32.gmra.mxu0 %v155
    %v387 = vpop.f32.mrf.mxu0
    %v388 = vadd.f32 %v347, %v387
    %389 = vmatmul.f32.gmra.mxu0 %v159
    %v390 = vpop.f32.mrf.mxu0
    %v391 = vadd.f32 %v350, %v390
    %392 = vmatmul.f32.gmra.mxu0 %v163
    %v393 = vpop.f32.mrf.mxu0
    %v394 = vadd.f32 %v353, %v393
    %395 = vdwg.mxu0
    %396 = vmatpush.msra.mxu0 %v254
    %397 = vmatpush.msra.mxu0 %v253
    %398 = vmatpush.msra.mxu0 %v252
    %399 = vmatpush.msra.mxu0 %v251
    %400 = vmatpush.msra.mxu0 %v250
    %401 = vmatpush.msra.mxu0 %v249
    %402 = vmatpush.msra.mxu0 %v248
    %403 = vmatpush.msra.mxu0 %v247
    %404 = vmatpush.msra.mxu0 %v246
    %405 = vmatpush.msra.mxu0 %v245
    %406 = vmatpush.msra.mxu0 %v244
    %407 = vmatpush.msra.mxu0 %v243
    %408 = vmatpush.msra.mxu0 %v242
    %409 = vmatpush.msra.mxu0 %v241
    %410 = vmatpush.msra.mxu0 %v240
    %411 = vmatpush.msra.mxu0 %v239
    %412 = vmatmul.f32.gmra.mxu0 %v136
    %v413 = vpop.f32.mrf.mxu0
    %v414 = vadd.f32 %v373, %v413
    %415 = vmatmul.f32.gmra.mxu0 %v140
    %v416 = vpop.f32.mrf.mxu0
    %v417 = vadd.f32 %v376, %v416
    %418 = vmatmul.f32.gmra.mxu0 %v144
    %v419 = vpop.f32.mrf.mxu0
    %v420 = vadd.f32 %v379, %v419
    %421 = vmatmul.f32.gmra.mxu0 %v148
    %v422 = vpop.f32.mrf.mxu0
    %v423 = vadd.f32 %v382, %v422
    %424 = vmatmul.f32.gmra.mxu0 %v152
    %v425 = vpop.f32.mrf.mxu0
    %v426 = vadd.f32 %v385, %v425
    %427 = vmatmul.f32.gmra.mxu0 %v156
    %v428 = vpop.f32.mrf.mxu0
    %v429 = vadd.f32 %v388, %v428
    %430 = vmatmul.f32.gmra.mxu0 %v160
    %v431 = vpop.f32.mrf.mxu0
    %v432 = vadd.f32 %v391, %v431
    %433 = vmatmul.f32.gmra.mxu0 %v164
    %v434 = vpop.f32.mrf.mxu0
    %v435 = vadd.f32 %v394, %v434
    %436 = vdwg.mxu0
    %437 = vmatpush.msra.mxu0 %v270
    %438 = vmatpush.msra.mxu0 %v269
    %439 = vmatpush.msra.mxu0 %v268
    %440 = vmatpush.msra.mxu0 %v267
    %441 = vmatpush.msra.mxu0 %v266
    %442 = vmatpush.msra.mxu0 %v265
    %443 = vmatpush.msra.mxu0 %v264
    %444 = vmatpush.msra.mxu0 %v263
    %445 = vmatpush.msra.mxu0 %v262
    %446 = vmatpush.msra.mxu0 %v261
    %447 = vmatpush.msra.mxu0 %v260
    %448 = vmatpush.msra.mxu0 %v259
    %449 = vmatpush.msra.mxu0 %v258
    %450 = vmatpush.msra.mxu0 %v257
    %451 = vmatpush.msra.mxu0 %v256
    %452 = vmatpush.msra.mxu0 %v255
    %453 = vmatmul.f32.gmra.mxu0 %v137
    %v454 = vpop.f32.mrf.mxu0
    %v455 = vadd.f32 %v414, %v454
    %456 = vmatmul.f32.gmra.mxu0 %v141
    %v457 = vpop.f32.mrf.mxu0
    %v458 = vadd.f32 %v417, %v457
    %459 = vmatmul.f32.gmra.mxu0 %v145
    %v460 = vpop.f32.mrf.mxu0
    %v461 = vadd.f32 %v420, %v460
    %462 = vmatmul.f32.gmra.mxu0 %v149
    %v463 = vpop.f32.mrf.mxu0
    %v464 = vadd.f32 %v423, %v463
    %465 = vmatmul.f32.gmra.mxu0 %v153
    %v466 = vpop.f32.mrf.mxu0
    %v467 = vadd.f32 %v426, %v466
    %468 = vmatmul.f32.gmra.mxu0 %v157
    %v469 = vpop.f32.mrf.mxu0
    %v470 = vadd.f32 %v429, %v469
    %471 = vmatmul.f32.gmra.mxu0 %v161
    %v472 = vpop.f32.mrf.mxu0
    %v473 = vadd.f32 %v432, %v472
    %474 = vmatmul.f32.gmra.mxu0 %v165
    %v475 = vpop.f32.mrf.mxu0
    %v476 = vadd.f32 %v435, %v475
    %477 = vdwg.mxu0
    %478 = vmatpush.msra.mxu0 %v286
    %479 = vmatpush.msra.mxu0 %v285
    %480 = vmatpush.msra.mxu0 %v284
    %481 = vmatpush.msra.mxu0 %v283
    %482 = vmatpush.msra.mxu0 %v282
    %483 = vmatpush.msra.mxu0 %v281
    %484 = vmatpush.msra.mxu0 %v280
    %485 = vmatpush.msra.mxu0 %v279
    %486 = vmatpush.msra.mxu0 %v278
    %487 = vmatpush.msra.mxu0 %v277
    %488 = vmatpush.msra.mxu0 %v276
    %489 = vmatpush.msra.mxu0 %v275
    %490 = vmatpush.msra.mxu0 %v274
    %491 = vmatpush.msra.mxu0 %v273
    %492 = vmatpush.msra.mxu0 %v272
    %493 = vmatpush.msra.mxu0 %v271
    %494 = vmatmul.f32.gmra.mxu0 %v138
    %v495 = vpop.f32.mrf.mxu0
    %v496 = vadd.f32 %v455, %v495
    %497 = vmatmul.f32.gmra.mxu0 %v142
    %v498 = vpop.f32.mrf.mxu0
    %v499 = vadd.f32 %v458, %v498
    %500 = vmatmul.f32.gmra.mxu0 %v146
    %v501 = vpop.f32.mrf.mxu0
    %v502 = vadd.f32 %v461, %v501
    %503 = vmatmul.f32.gmra.mxu0 %v150
    %v504 = vpop.f32.mrf.mxu0
    %v505 = vadd.f32 %v464, %v504
    %506 = vmatmul.f32.gmra.mxu0 %v154
    %v507 = vpop.f32.mrf.mxu0
    %v508 = vadd.f32 %v467, %v507
    %509 = vmatmul.f32.gmra.mxu0 %v158
    %v510 = vpop.f32.mrf.mxu0
    %v511 = vadd.f32 %v470, %v510
    %512 = vmatmul.f32.gmra.mxu0 %v162
    %v513 = vpop.f32.mrf.mxu0
    %v514 = vadd.f32 %v473, %v513
    %515 = vmatmul.f32.gmra.mxu0 %v166
    %v516 = vpop.f32.mrf.mxu0
    %v517 = vadd.f32 %v476, %v516
    %518 = vdwg.mxu0
    %519 = vst [vmem:[#allocation5] sm:$0xff] %v496
    %520 = vst [vmem:[#allocation5 + $0x8] sm:$0xff] %v499
    %521 = vst [vmem:[#allocation5 + $0x10] sm:$0xff] %v502
    %522 = vst [vmem:[#allocation5 + $0x18] sm:$0xff] %v505
    %523 = vst [vmem:[#allocation5 + $0x20] sm:$0xff] %v508
    %524 = vst [vmem:[#allocation5 + $0x28] sm:$0xff] %v511
    %525 = vst [vmem:[#allocation5 + $0x30] sm:$0xff] %v514
    %526 = vst [vmem:[#allocation5 + $0x38] sm:$0xff] %v517
    // Predicated region
    $region22: #{tpu_custom_call.1} parent=1 // pred_check
      _
    $region23: #{tpu_custom_call.1} parent=1 // pred_check_branch
      %528 = sbr.rel (0) target = $region25
    $region24: #{tpu_custom_call.1} parent=1 // pred_region
      %530 = vsyncadd [#allocation4], 0
      %s531 = sshll.u32 [#allocation5], 4
      %s532 = int_to_ptr.vmem [resolvable:$true] %s531
      %s533 = sshll.u32 %s4, 4
      %s534 = int_to_ptr.hbm [resolvable:$true] %s533
      %539 = dma.vmem_to_hbm [thread:$0]  %s532, 1024, %s534, [#allocation4], 128, 128, 8
    $region25: #{tpu_custom_call.1} parent=1 // pred_fallthru
      _
    // Predicated region
    $region26: #{tpu_custom_call.1} parent=1 // pred_check
      _
    $region27: #{tpu_custom_call.1} parent=1 // pred_check_branch
      %541 = sbr.rel (0) target = $region29
    $region28: #{tpu_custom_call.1} parent=1 // pred_region
      %543 = dma.done [#allocation4], 1024
    $region29: #{tpu_custom_call.1} parent=1 // pred_fallthru
      _
    %544 = vsyncpa [#allocation3], 1
    %545 = vsyncpa [#allocation4], 1

</llo_original>
